<compile_context>
chip_gen: v5e
topology: v5e:2x2
jax: 0.10.0
libtpu: 0.0.40
codegen_flags: <defaults>
</compile_context>

<pallas_src>
import functools

import jax
import jax.numpy as jnp
import numpy as np
from jax import lax
from jax.experimental import pallas as pl
from jax.experimental.pallas import tpu as pltpu


# -----------------------------------------------------------------------------
# Pallas kernel.  grid = (B, num_vqs, T // block_t); one (batch, group, tile)
# per step, t innermost so the per-group tables stay resident across the time
# sweep and only one group's tables are live at a time.
#   z_ref     : (1, 1, block_t, d)   input slab, matmul dtype
#   wd_ref    : (1, d, cd)           down_proj.weight.T for this group
#   cb_ref    : (1, K, cd)           codebook (pre-normalized if l2norm)
#   proj_ref  : (1, K, d)            fused codebook @ up_proj.weight.T   (normal)
#               (1, cd, d)           up_proj.weight.T                    (freeze_vq)
#   hcsq_ref  : (1, 1, K)            0.5*||c_k||^2 (read only when l2norm=False)
# outputs
#   zq_ref    : (1, 1, block_t, d)   up-projected quantized slab (f32)
#   codes_ref : (1, 1, block_t, 1)   int32 codes (sublane column, no transpose)
#   loss_ref  : (1, 1, 1, 1)         sum over the tile of ||z_q_cd - z_e_cd||^2
# -----------------------------------------------------------------------------
def _pvq_kernel(z_ref, wd_ref, cb_ref, proj_ref, hcsq_ref,
                zq_ref, codes_ref, loss_ref, *, l2norm, freeze_vq, mm_dtype):
    block_t = z_ref.shape[2]
    K = cb_ref.shape[1]

    # down projection (no bias); f32 accumulation on the MXU
    z_e = jnp.dot(z_ref[0, 0], wd_ref[0],
                  preferred_element_type=jnp.float32)              # (block_t, cd)

    # Nearest codeword.  With l2norm the codewords are unit norm and
    #   argmin_k ||z/||z|| - c_k||^2 == argmax_k <z, c_k>
    # (positive per-row scaling never changes the argmax), so the input-side
    # normalization is dropped.  For l2norm=False, subtract the hoisted
    # 0.5*||c_k||^2 bias so argmax(sim) == argmin ||z_e - c_k||^2.
    sim = lax.dot_general(z_e.astype(mm_dtype), cb_ref[0],
                          (((1,), (1,)), ((), ())),
                          preferred_element_type=jnp.float32)      # (block_t, K)
    if not l2norm:
        sim = sim - hcsq_ref[0]                                    # (1, K) bcast

    # First-argmax via max + masked-min (jnp.argmax is a variadic reduce that
    # Mosaic does not reliably lower).
    max_sim = jnp.max(sim, axis=-1, keepdims=True)                 # (block_t, 1)
    lane_idx = lax.broadcasted_iota(jnp.int32, (block_t, K), 1)
    code = jnp.min(jnp.where(sim == max_sim, lane_idx, K),
                   axis=-1, keepdims=True)                         # (block_t, 1)

    # codes stored as a sublane column -> no XLU transpose at all.
    codes_ref[0, 0] = code.astype(jnp.int32)

    if freeze_vq:
        # PyTorch: z_q_m = z_q_m*0 + z_e_m; losses zeroed; codes still computed.
        zq_ref[0, 0] = jnp.dot(z_e.astype(mm_dtype), proj_ref[0],
                               preferred_element_type=jnp.float32)
        loss_ref[0, 0] = jnp.zeros((1, 1), jnp.float32)
    else:
        # Fused dequantize + up-projection: single matmul contracting over K.
        one_hot = (lane_idx == code).astype(mm_dtype)              # (block_t, K)
        zq_ref[0, 0] = jnp.dot(one_hot, proj_ref[0],
                               preferred_element_type=jnp.float32)  # (block_t, d)

        # SSE computed algebraically from quantities already on hand:
        #   ||z_e - c*||^2 = ||z_e||^2 - 2<z_e, c*> + ||c*||^2
        # l2norm:  max_sim == <z_e, c*> and ||c*||^2 == 1   (+1 per row)
        # else:    max_sim == <z_e, c*> - 0.5||c*||^2       (-2*max folds both)
        sse = (jnp.sum(z_e * z_e, keepdims=True)
               - 2.0 * jnp.sum(max_sim, keepdims=True))            # (1, 1)
        if l2norm:
            sse = sse + jnp.float32(block_t)
        loss_ref[0, 0] = sse


# -----------------------------------------------------------------------------
# plain-JAX glue (== pre_process / post_process of the reference)
# -----------------------------------------------------------------------------
def pre_process(z_e, in_freq, overlap, fix_dim, dims):
    if dims == 3:                                   # (B, H*W, C) transformer
        B, HW, C = z_e.shape
        W = HW // in_freq
        z = z_e.reshape(B, in_freq, W, C).transpose(0, 2, 3, 1).reshape(B, W, C * in_freq)
    elif dims == 4:                                 # (B, C, H, W) convolution
        B, C, H, W = z_e.shape
        z = jnp.transpose(z_e, (0, 3, 1, 2)).reshape(B, W, C * H)
    else:
        raise ValueError("dims must be 3 or 4")
    if overlap > 1:
        assert z.shape[1] % overlap == 0, "Time dimension must be multiple of overlap"
        z = z.reshape(z.shape[0], z.shape[1] // overlap, overlap * fix_dim)
    return z


def post_process(z_q, in_freq, overlap, fix_dim, dims):
    B = z_q.shape[0]
    if overlap > 1:
        z_q = z_q.reshape(B, -1, fix_dim)
    W = z_q.shape[1]
    C = fix_dim // in_freq
    z = z_q.reshape(B, W, C, in_freq)               # b w c h
    if dims == 3:
        return jnp.transpose(z, (0, 3, 1, 2)).reshape(B, in_freq * W, C)
    elif dims == 4:
        return jnp.transpose(z, (0, 2, 3, 1))       # b c h w
    raise ValueError("dims must be 3 or 4")


def _normalize_codebooks(codebooks, l2norm):
    cb = codebooks.astype(jnp.float32)
    if l2norm:
        cb = cb / jnp.maximum(
            jnp.sqrt(jnp.sum(cb * cb, axis=-1, keepdims=True)), 1e-12)
    return cb


def _padded_block_bytes(shape, dtype):
    """Conservative VMEM footprint of a block after (8,128)/packing padding."""
    itemsize = jnp.dtype(dtype).itemsize
    s = [int(v) for v in shape]
    if len(s) < 2:
        s = [1] * (2 - len(s)) + s
    lead = 1
    for v in s[:-2]:
        lead *= v
    sub_tile = 8 * max(1, 4 // itemsize)
    sub = -(-s[-2] // sub_tile) * sub_tile
    lane = -(-s[-1] // 128) * 128
    return lead * sub * lane * itemsize


def make_params(key, *, in_dim, in_freq, overlap, num_vqs, codebook_dim, codebook_size):
    """Deterministic synthetic parameters (PyTorch nn.Linear / nn.Embedding shapes)."""
    fix_dim = in_dim * in_freq
    hidden = fix_dim * overlap
    assert hidden % num_vqs == 0
    d = hidden // num_vqs
    k1, k2, k3 = jax.random.split(key, 3)
    # stacked down_projs[m].weight : (cd, d); up_projs[m].weight : (d, cd)
    w_down = jax.random.normal(k1, (num_vqs, codebook_dim, d), jnp.float32) / jnp.sqrt(d)
    w_up = jax.random.normal(k2, (num_vqs, d, codebook_dim), jnp.float32) / jnp.sqrt(codebook_dim)
    codebooks = jax.random.normal(k3, (num_vqs, codebook_size, codebook_dim), jnp.float32)
    return dict(w_down=w_down, w_up=w_up, codebooks=codebooks)


def _forward_impl(z_e, params, *, in_dim, in_freq, overlap, num_vqs,
                  l2norm, freeze_vq, matmul_dtype, block_t):
    fix_dim = in_freq * in_dim
    hidden = fix_dim * overlap
    dims = z_e.ndim
    mm = jnp.dtype(matmul_dtype)

    z_pre = pre_process(z_e, in_freq, overlap, fix_dim, dims).astype(jnp.float32)
    B, T, hid = z_pre.shape
    assert hid == hidden

    # TODO(synk): uneven split_dimension groups (hidden % num_vqs != 0) would
    # need per-group padding; only the equal-split case is implemented.
    assert hidden % num_vqs == 0, "hidden dim must split evenly across num_vqs"
    d = hidden // num_vqs

    cd = params['w_down'].shape[1]
    K = params['codebooks'].shape[1]
    assert params['codebooks'].shape == (num_vqs, K, cd)
    assert params['w_down'].shape == (num_vqs, cd, d)
    assert params['w_up'].shape == (num_vqs, d, cd)

    # ---- parameter prep: hoisted, done once per call (all tiny) ----
    cb_n = _normalize_codebooks(params['codebooks'], l2norm)          # (m, K, cd) f32
    wd = jnp.transpose(params['w_down'], (0, 2, 1)).astype(mm)        # (m, d, cd)
    wu = jnp.transpose(params['w_up'], (0, 2, 1))                     # (m, cd, d) f32
    if freeze_vq:
        proj = wu.astype(mm)                                          # (m, cd, d)
    else:
        # fused dequantize + up-projection table: one_hot @ (codebook @ up_proj.T)
        proj = jnp.einsum('mkc,mcd->mkd', cb_n, wu).astype(mm)        # (m, K, d)
    cb = cb_n.astype(mm)
    hcsq = (0.5 * jnp.sum(cb_n * cb_n, axis=-1)).reshape(num_vqs, 1, K)  # f32
    pK = cd if freeze_vq else K

    # ---- group-major activation layout (B, num_vqs, T, d) ----
    # Pure reshape + transpose; under jit XLA fuses this with pre_process's own
    # transposes into a single HBM copy (no extra round trip), and the bf16 cast
    # halves the kernel's input HBM traffic.
    z_grp = z_pre.reshape(B, T, num_vqs, d).transpose(0, 2, 1, 3).astype(mm)

    # ---- time tiling & VMEM budget (per-step footprint, double-buffered) ----
    def _block_bytes(bt):
        tot = 0
        tot += 2 * _padded_block_bytes((1, 1, bt, d), mm)              # z in
        tot += 2 * _padded_block_bytes((1, 1, bt, d), jnp.float32)     # zq out
        tot += 2 * _padded_block_bytes((1, 1, bt, 1), jnp.int32)       # codes out
        tot += 2 * _padded_block_bytes((1, 1, 1, 1), jnp.float32)      # loss out
        tot += 2 * _padded_block_bytes((1, d, cd), mm)                 # wd
        tot += 2 * _padded_block_bytes((1, K, cd), mm)                 # cb
        tot += 2 * _padded_block_bytes((1, pK, d), mm)                 # proj / wu
        tot += 2 * _padded_block_bytes((1, 1, K), jnp.float32)         # hcsq
        return tot

    if block_t is None:
        block_t = T
        budget = 16 * 2 ** 20
        for cand in (2048, 1024, 512, 256, 128):
            if T % cand == 0 and _block_bytes(cand) <= budget:
                block_t = cand
                break
    assert T % block_t == 0
    nT = T // block_t
    vmem_limit = int(min(64 * 2 ** 20, max(32 * 2 ** 20, 2 * _block_bytes(block_t))))

    kernel = functools.partial(_pvq_kernel, l2norm=l2norm, freeze_vq=freeze_vq,
                               mm_dtype=mm)

    out_shapes = [
        jax.ShapeDtypeStruct((B, num_vqs, T, d), jnp.float32),
        jax.ShapeDtypeStruct((B, num_vqs, T, 1), jnp.int32),
        jax.ShapeDtypeStruct((B * num_vqs, nT, 1, 1), jnp.float32),
    ]
    in_specs = [
        pl.BlockSpec((1, 1, block_t, d), lambda b, m, t: (b, m, t, 0)),
        pl.BlockSpec((1, d, cd), lambda b, m, t: (m, 0, 0)),
        pl.BlockSpec((1, K, cd), lambda b, m, t: (m, 0, 0)),
        pl.BlockSpec((1, pK, d), lambda b, m, t: (m, 0, 0)),
        pl.BlockSpec((1, 1, K), lambda b, m, t: (m, 0, 0)),
    ]
    out_specs = [
        pl.BlockSpec((1, 1, block_t, d), lambda b, m, t: (b, m, t, 0)),
        pl.BlockSpec((1, 1, block_t, 1), lambda b, m, t: (b, m, t, 0)),
        pl.BlockSpec((1, 1, 1, 1), lambda b, m, t: (b * num_vqs + m, t, 0, 0)),
    ]

    zq_grp, codes4, loss_blocks = pl.pallas_call(
        kernel,
        out_shape=out_shapes,
        grid=(B, num_vqs, nT),
        in_specs=in_specs,
        out_specs=out_specs,
        compiler_params=pltpu.CompilerParams(
            dimension_semantics=("parallel", "parallel", "parallel"),
            vmem_limit_bytes=vmem_limit),
    )(z_grp, wd, cb, proj, hcsq)

    # un-permute; fused with post_process's transposes under jit.
    zq_flat = zq_grp.transpose(0, 2, 1, 3).reshape(B, T, hidden)
    codes = codes4[..., 0]                                             # (B, m, T)
    # sum_m mse_m / num_vqs, with mse_m averaged over B*T*cd elements.
    loss = jnp.sum(loss_blocks) / jnp.float32(num_vqs * B * T * cd)

    return {
        'z_q': post_process(zq_flat, in_freq, overlap, fix_dim, dims),
        'codes': codes,          # int32 (PyTorch would return int64)
        'cb_loss': loss,
        'cm_loss': loss,         # identical forward value (stop-grad differs only in backward)
    }


# Public jitted entry point: jitting makes XLA fuse all the layout plumbing
# (pre/post_process transposes + group-major permutes + dtype casts) into a
# single copy each way around the Pallas call.
@functools.partial(jax.jit, static_argnames=(
    'in_dim', 'in_freq', 'overlap', 'num_vqs', 'l2norm', 'freeze_vq',
    'matmul_dtype', 'block_t'))
def product_vector_quantize_forward(z_e, params, *, in_dim, in_freq, overlap,
                                    num_vqs, l2norm=True, freeze_vq=False,
                                    matmul_dtype=jnp.bfloat16, block_t=None):
    # matmul_dtype=bf16 is the fast path (native MXU format on v5e/v6e/v7x);
    # pass jnp.float32 if bit-exact code selection vs. the f32 eval path matters.
    return _forward_impl(z_e, params, in_dim=in_dim, in_freq=in_freq,
                         overlap=overlap, num_vqs=num_vqs, l2norm=l2norm,
                         freeze_vq=freeze_vq, matmul_dtype=matmul_dtype,
                         block_t=block_t)


# -----------------------------------------------------------------------------
# pure-JAX structural reference check (tolerant to bf16 operands / MXU passes)
# -----------------------------------------------------------------------------
def _reference_check(x, params, out, *, in_dim, in_freq, overlap, num_vqs, l2norm):
    fix_dim = in_dim * in_freq
    hidden = fix_dim * overlap
    d = hidden // num_vqs
    cd = params['w_down'].shape[1]
    K = params['codebooks'].shape[1]
    hp = lax.Precision.HIGHEST

    z = pre_process(x, in_freq, overlap, fix_dim, x.ndim).astype(jnp.float32)
    B, T, _ = z.shape
    zg = z.reshape(B, T, num_vqs, d).transpose(0, 2, 1, 3)               # (B,m,T,d)
    wd = jnp.transpose(params['w_down'], (0, 2, 1))
    wu = jnp.transpose(params['w_up'], (0, 2, 1))
    cb = _normalize_codebooks(params['codebooks'], l2norm)

    zd = jnp.einsum('bmtd,mdc->bmtc', zg, wd, precision=hp)
    sim = jnp.einsum('bmtc,mkc->bmtk', zd, cb, precision=hp)
    if not l2norm:
        sim = sim - 0.5 * jnp.sum(cb * cb, -1)[None, :, None, :]

    # kernel-selected codes must be (near-)argmax of the reference similarity
    best = np.asarray(jnp.max(sim, axis=-1))
    chosen = np.asarray(jnp.take_along_axis(
        sim, out['codes'][..., None].astype(jnp.int32), axis=-1))[..., 0]
    assert np.all(best - chosen <= 0.05 + 0.05 * np.abs(best)), "codes are not argmax"

    # rebuild z_q / loss from the kernel's codes; loose tolerances because the
    # kernel runs bf16 MXU operands with f32 accumulation.
    oh = jax.nn.one_hot(out['codes'], K, dtype=jnp.float32)
    zq_cd = jnp.einsum('bmtk,mkc->bmtc', oh, cb, precision=hp)
    loss = jnp.sum((zq_cd - zd) ** 2) / (num_vqs * B * T * cd)
    zq = jnp.einsum('bmtc,mcd->bmtd', zq_cd, wu, precision=hp)
    zq = zq.transpose(0, 2, 1, 3).reshape(B, T, hidden)
    zq = post_process(zq, in_freq, overlap, fix_dim, x.ndim)
    np.testing.assert_allclose(np.asarray(out['z_q']), np.asarray(zq),
                               rtol=5e-2, atol=5e-2)
    np.testing.assert_allclose(float(out['cb_loss']), float(loss),
                               rtol=5e-2, atol=5e-2)


if __name__ == "__main__":
    # small but structurally faithful configuration
    B, in_dim, in_freq, W = 2, 4, 4, 16              # x: (B, C, H, W) NCHW
    overlap, num_vqs = 4, 4                          # hidden = 64, d = 16
    codebook_dim, codebook_size = 8, 128

    key = jax.random.PRNGKey(0)
    kx, kp = jax.random.split(key)
    x = jax.random.normal(kx, (B, in_dim, in_freq, W), jnp.float32)

    params = make_params(kp, in_dim=in_dim, in_freq=in_freq, overlap=overlap,
                         num_vqs=num_vqs, codebook_dim=codebook_dim,
                         codebook_size=codebook_size)

    out = product_vector_quantize_forward(
        x, params, in_dim=in_dim, in_freq=in_freq, overlap=overlap,
        num_vqs=num_vqs, l2norm=True, freeze_vq=False)
    out = jax.tree_util.tree_map(jax.block_until_ready, out)

    T = W // overlap
    assert out['z_q'].shape == (B, in_dim, in_freq, W)
    assert out['codes'].shape == (B, num_vqs, T) and out['codes'].dtype == jnp.int32
    assert out['cb_loss'].shape == () and out['cm_loss'].shape == ()

    _reference_check(x, params, out, in_dim=in_dim, in_freq=in_freq,
                     overlap=overlap, num_vqs=num_vqs, l2norm=True)

    print("KERNEL_OK")
</pallas_src>

<mosaic_0001>
module attributes {stable_mosaic.version = 11 : i64} {
  func.func @_pvq_kernel(%arg0: i32, %arg1: i32, %arg2: i32, %arg3: memref<1x1x4x16xbf16, #tpu.memory_space<vmem>>, %arg4: memref<1x16x8xbf16, #tpu.memory_space<vmem>>, %arg5: memref<1x128x8xbf16, #tpu.memory_space<vmem>>, %arg6: memref<1x128x16xbf16, #tpu.memory_space<vmem>>, %arg7: memref<1x1x128xf32, #tpu.memory_space<vmem>>, %arg8: memref<1x1x4x16xf32, #tpu.memory_space<vmem>>, %arg9: memref<1x1x4x1xi32, #tpu.memory_space<vmem>>, %arg10: memref<1x1x1x1xf32, #tpu.memory_space<vmem>>) attributes {dimension_semantics = [#tpu.dimension_semantics<parallel>, #tpu.dimension_semantics<parallel>, #tpu.dimension_semantics<parallel>], iteration_bounds = array<i64: 2, 4, 1>, scalar_prefetch = 0 : i64, scratch_operands = 0 : i64, tpu.core_type = #tpu.core_type<tc>, window_params = [{transform_indices = @transform_0, window_bounds = array<i64: 1, 1, 4, 16>}, {transform_indices = @transform_1, window_bounds = array<i64: 1, 16, 8>}, {transform_indices = @transform_2, window_bounds = array<i64: 1, 128, 8>}, {transform_indices = @transform_3, window_bounds = array<i64: 1, 128, 16>}, {transform_indices = @transform_4, window_bounds = array<i64: 1, 1, 128>}, {transform_indices = @transform_5, window_bounds = array<i64: 1, 1, 4, 16>}, {transform_indices = @transform_6, window_bounds = array<i64: 1, 1, 4, 1>}, {transform_indices = @transform_7, window_bounds = array<i64: 1, 1, 1, 1>}]} {
    %c0 = arith.constant 0 : index
    %c0_0 = arith.constant 0 : index
    %c0_1 = arith.constant 0 : index
    %c0_2 = arith.constant 0 : index
    %0 = vector.load %arg3[%c0, %c0_0, %c0_1, %c0_2] : memref<1x1x4x16xbf16, #tpu.memory_space<vmem>>, vector<1x1x4x16xbf16>
    %1 = vector.shape_cast %0 : vector<1x1x4x16xbf16> to vector<4x16xbf16>
    %c0_3 = arith.constant 0 : index
    %c0_4 = arith.constant 0 : index
    %c0_5 = arith.constant 0 : index
    %2 = vector.load %arg4[%c0_3, %c0_4, %c0_5] : memref<1x16x8xbf16, #tpu.memory_space<vmem>>, vector<1x16x8xbf16>
    %3 = vector.shape_cast %2 : vector<1x16x8xbf16> to vector<16x8xbf16>
    %cst = arith.constant dense<0.000000e+00> : vector<4x8xf32>
    %4 = tpu.matmul %1, %3, %cst {dimension_numbers = #tpu.dot_dimension_numbers<[1], [0], [0], [1], [0, 0, 1, 1], [], []>} : vector<4x16xbf16>, vector<16x8xbf16>, vector<4x8xf32> -> vector<4x8xf32>
    %5 = arith.truncf %4 : vector<4x8xf32> to vector<4x8xbf16>
    %c0_6 = arith.constant 0 : index
    %c0_7 = arith.constant 0 : index
    %c0_8 = arith.constant 0 : index
    %6 = vector.load %arg5[%c0_6, %c0_7, %c0_8] : memref<1x128x8xbf16, #tpu.memory_space<vmem>>, vector<1x128x8xbf16>
    %7 = vector.shape_cast %6 : vector<1x128x8xbf16> to vector<128x8xbf16>
    %cst_9 = arith.constant dense<0.000000e+00> : vector<4x128xf32>
    %8 = tpu.matmul %5, %7, %cst_9 {dimension_numbers = #tpu.dot_dimension_numbers<[1], [1], [0], [0], [0, 0, 1, 0], [], []>} : vector<4x8xbf16>, vector<128x8xbf16>, vector<4x128xf32> -> vector<4x128xf32>
    %cst_10 = arith.constant dense<0xFF800000> : vector<4xf32>
    %9 = vector.multi_reduction <maximumf>, %8, %cst_10 [1] : vector<4x128xf32> to vector<4xf32>
    %10 = vector.shape_cast %9 : vector<4xf32> to vector<4x1xf32>
    %11 = tpu.iota {dimensions = array<i32: 1>} : vector<4x128xi32>
    %12 = vector.broadcast %10 : vector<4x1xf32> to vector<4x128xf32>
    %13 = arith.cmpf oeq, %8, %12 : vector<4x128xf32>
    %c128_i32 = arith.constant 128 : i32
    %14 = vector.broadcast %c128_i32 : i32 to vector<4x128xi32>
    %15 = arith.select %13, %11, %14 : vector<4x128xi1>, vector<4x128xi32>
    %cst_11 = arith.constant dense<2147483647> : vector<4xi32>
    %16 = vector.multi_reduction <minsi>, %15, %cst_11 [1] : vector<4x128xi32> to vector<4xi32>
    %17 = vector.shape_cast %16 : vector<4xi32> to vector<4x1xi32>
    %c0_12 = arith.constant 0 : index
    %c0_13 = arith.constant 0 : index
    %c0_14 = arith.constant 0 : index
    %c0_15 = arith.constant 0 : index
    %18 = vector.load %arg9[%c0_12, %c0_13, %c0_14, %c0_15] : memref<1x1x4x1xi32, #tpu.memory_space<vmem>>, vector<1x1x4x1xi32>
    %19 = vector.shape_cast %18 : vector<1x1x4x1xi32> to vector<4x1xi32>
    %20 = vector.shape_cast %17 : vector<4x1xi32> to vector<1x1x4x1xi32>
    tpu.vector_store %arg9[%c0_12, %c0_13, %c0_14, %c0_15], %20 {strides = array<i32>} : memref<1x1x4x1xi32, #tpu.memory_space<vmem>>, vector<1x1x4x1xi32>,
    %21 = vector.broadcast %17 : vector<4x1xi32> to vector<4x128xi32>
    %22 = arith.cmpi eq, %11, %21 : vector<4x128xi32>
    %23 = arith.extui %22 : vector<4x128xi1> to vector<4x128xi32>
    %24 = arith.sitofp %23 : vector<4x128xi32> to vector<4x128xf32>
    %25 = arith.truncf %24 : vector<4x128xf32> to vector<4x128xbf16>
    %c0_16 = arith.constant 0 : index
    %c0_17 = arith.constant 0 : index
    %c0_18 = arith.constant 0 : index
    %26 = vector.load %arg6[%c0_16, %c0_17, %c0_18] : memref<1x128x16xbf16, #tpu.memory_space<vmem>>, vector<1x128x16xbf16>
    %27 = vector.shape_cast %26 : vector<1x128x16xbf16> to vector<128x16xbf16>
    %cst_19 = arith.constant dense<0.000000e+00> : vector<4x16xf32>
    %28 = tpu.matmul %25, %27, %cst_19 {dimension_numbers = #tpu.dot_dimension_numbers<[1], [0], [0], [1], [0, 0, 1, 1], [], []>} : vector<4x128xbf16>, vector<128x16xbf16>, vector<4x16xf32> -> vector<4x16xf32>
    %c0_20 = arith.constant 0 : index
    %c0_21 = arith.constant 0 : index
    %c0_22 = arith.constant 0 : index
    %c0_23 = arith.constant 0 : index
    %29 = vector.load %arg8[%c0_20, %c0_21, %c0_22, %c0_23] : memref<1x1x4x16xf32, #tpu.memory_space<vmem>>, vector<1x1x4x16xf32>
    %30 = vector.shape_cast %29 : vector<1x1x4x16xf32> to vector<4x16xf32>
    %31 = vector.shape_cast %28 : vector<4x16xf32> to vector<1x1x4x16xf32>
    tpu.vector_store %arg8[%c0_20, %c0_21, %c0_22, %c0_23], %31 {strides = array<i32>} : memref<1x1x4x16xf32, #tpu.memory_space<vmem>>, vector<1x1x4x16xf32>,
    %32 = arith.mulf %4, %4 : vector<4x8xf32>
    %33 = vector.shape_cast %32 : vector<4x8xf32> to vector<1x4x8xf32>
    %cst_24 = arith.constant dense<0.000000e+00> : vector<1xf32>
    %34 = vector.multi_reduction <add>, %33, %cst_24 [1, 2] : vector<1x4x8xf32> to vector<1xf32>
    %35 = vector.shape_cast %34 : vector<1xf32> to vector<1x1x1xf32>
    %36 = vector.extract %35[0, 0, 0] : f32 from vector<1x1x1xf32>
    %37 = vector.broadcast %36 : f32 to vector<1x1xf32>
    %38 = vector.shape_cast %10 : vector<4x1xf32> to vector<1x4x1xf32>
    %cst_25 = arith.constant dense<0.000000e+00> : vector<1xf32>
    %39 = vector.multi_reduction <add>, %38, %cst_25 [1, 2] : vector<1x4x1xf32> to vector<1xf32>
    %40 = vector.shape_cast %39 : vector<1xf32> to vector<1x1x1xf32>
    %41 = vector.extract %40[0, 0, 0] : f32 from vector<1x1x1xf32>
    %42 = vector.broadcast %41 : f32 to vector<1x1xf32>
    %cst_26 = arith.constant 2.000000e+00 : f32
    %43 = vector.broadcast %cst_26 : f32 to vector<1x1xf32>
    %44 = arith.mulf %43, %42 : vector<1x1xf32>
    %45 = arith.subf %37, %44 : vector<1x1xf32>
    %cst_27 = arith.constant 4.000000e+00 : f32
    %46 = vector.broadcast %cst_27 : f32 to vector<1x1xf32>
    %47 = arith.addf %45, %46 : vector<1x1xf32>
    %c0_28 = arith.constant 0 : index
    %c0_29 = arith.constant 0 : index
    %c0_30 = arith.constant 0 : index
    %c0_31 = arith.constant 0 : index
    %48 = vector.load %arg10[%c0_28, %c0_29, %c0_30, %c0_31] : memref<1x1x1x1xf32, #tpu.memory_space<vmem>>, vector<1x1x1x1xf32>
    %49 = vector.shape_cast %48 : vector<1x1x1x1xf32> to vector<1x1xf32>
    %50 = vector.shape_cast %47 : vector<1x1xf32> to vector<1x1x1x1xf32>
    tpu.vector_store %arg10[%c0_28, %c0_29, %c0_30, %c0_31], %50 {strides = array<i32>} : memref<1x1x1x1xf32, #tpu.memory_space<vmem>>, vector<1x1x1x1xf32>,
    return
  }
  func.func @transform_0(%arg0: i32, %arg1: i32, %arg2: i32) -> (i32, i32, i32, i32) {
    %c0_i32 = arith.constant 0 : i32
    %c0_i32_0 = arith.constant 0 : i32
    return %arg0, %arg1, %arg2, %c0_i32 : i32, i32, i32, i32
  }
  func.func @transform_1(%arg0: i32, %arg1: i32, %arg2: i32) -> (i32, i32, i32) {
    %c0_i32 = arith.constant 0 : i32
    %c0_i32_0 = arith.constant 0 : i32
    %c0_i32_1 = arith.constant 0 : i32
    return %arg1, %c0_i32, %c0_i32_0 : i32, i32, i32
  }
  func.func @transform_2(%arg0: i32, %arg1: i32, %arg2: i32) -> (i32, i32, i32) {
    %c0_i32 = arith.constant 0 : i32
    %c0_i32_0 = arith.constant 0 : i32
    %c0_i32_1 = arith.constant 0 : i32
    return %arg1, %c0_i32, %c0_i32_0 : i32, i32, i32
  }
  func.func @transform_3(%arg0: i32, %arg1: i32, %arg2: i32) -> (i32, i32, i32) {
    %c0_i32 = arith.constant 0 : i32
    %c0_i32_0 = arith.constant 0 : i32
    %c0_i32_1 = arith.constant 0 : i32
    return %arg1, %c0_i32, %c0_i32_0 : i32, i32, i32
  }
  func.func @transform_4(%arg0: i32, %arg1: i32, %arg2: i32) -> (i32, i32, i32) {
    %c0_i32 = arith.constant 0 : i32
    %c0_i32_0 = arith.constant 0 : i32
    %c0_i32_1 = arith.constant 0 : i32
    return %arg1, %c0_i32, %c0_i32_0 : i32, i32, i32
  }
  func.func @transform_5(%arg0: i32, %arg1: i32, %arg2: i32) -> (i32, i32, i32, i32) {
    %c0_i32 = arith.constant 0 : i32
    %c0_i32_0 = arith.constant 0 : i32
    return %arg0, %arg1, %arg2, %c0_i32 : i32, i32, i32, i32
  }
  func.func @transform_6(%arg0: i32, %arg1: i32, %arg2: i32) -> (i32, i32, i32, i32) {
    %c0_i32 = arith.constant 0 : i32
    %c0_i32_0 = arith.constant 0 : i32
    return %arg0, %arg1, %arg2, %c0_i32 : i32, i32, i32, i32
  }
  func.func @transform_7(%arg0: i32, %arg1: i32, %arg2: i32) -> (i32, i32, i32, i32) {
    %c4_i32 = arith.constant 4 : i32
    %0 = arith.muli %arg0, %c4_i32 : i32
    %1 = arith.addi %0, %arg1 : i32
    %c0_i32 = arith.constant 0 : i32
    %c0_i32_0 = arith.constant 0 : i32
    %c0_i32_1 = arith.constant 0 : i32
    return %1, %arg2, %c0_i32, %c0_i32_0 : i32, i32, i32, i32
  }
}

</mosaic_0001>

<llo_original>
// kernel: product_vector_quantize_forward.1
$region0: #{product_vector_quantize_forward.1}
  #allocation0 [shape = 'u32[]', space=smem, size = 0x4, offset = 0x4, fixed_abs, tag = 'smem constant byte address 0x4 - core index']
  #allocation1 [shape = 'u32[72,128]{1,0:T(1,128)}', space=vmem, size = 0x9000, scoped, tag = 'internal scratch']
  %s0 = inlined_call_operand.vmem [shape: bf16[2,4,4,16], index: 0, kind: input, shape index: {}]
  %s1 = inlined_call_operand.vmem [shape: bf16[4,16,8], index: 1, kind: input, shape index: {}]
  %s2 = inlined_call_operand.vmem [shape: bf16[4,128,8], index: 2, kind: input, shape index: {}]
  %s3 = inlined_call_operand.vmem [shape: bf16[4,128,16], index: 3, kind: input, shape index: {}]
  %s4 = inlined_call_operand.vmem [shape: f32[4,1,128], index: 4, kind: input, shape index: {}]
  %s5 = inlined_call_operand.vmem [shape: f32[2,4,4,16], index: 5, kind: output, shape index: {0}]
  %s6 = inlined_call_operand.vmem [shape: s32[2,4,4,1], index: 6, kind: output, shape index: {1}]
  %s7 = inlined_call_operand.vmem [shape: f32[8,1,1,1], index: 7, kind: output, shape index: {2}]
  %8 = xla_tuple %s5, %s6, %s7
  %s9 = sld [smem:[#allocation0]]
  $region69: #{product_vector_quantize_forward.1} parent=0
    _
  %s11 = ssub.s32 1, %s9
  %s12 = scalar_select 0, %s11, %s9
  loop: start=0, step=1, limit=10
  $region2: #{product_vector_quantize_forward.1} parent=0 // loop_pre_header
    _
  $region3: #{product_vector_quantize_forward.1} parent=0 // loop_header
    %s14 = sphi 0, %s18
    %p15 = scmp.ge.s32.totalorder %s14, 10
    %s21 = sphi 0, %s40
    %s22 = sphi 0, %s36
    %s23 = sphi 0, %s32
    %s24 = sphi 0, %s21
    %s25 = sphi 0, %s22
    %s26 = sphi 0, %s23
    %s27 = sphi 0, %s24
    %s28 = sphi 0, %s25
    %s29 = sphi 0, %s26
    %s47 = sphi 0, %s49
    %s50 = sphi 0, %s47
    %s51 = sphi 0, %s50
    %s67 = sphi 0, %s51
    %s73 = sphi 0, %s75
    %s76 = sphi 0, %s73
    %s77 = sphi 0, %s76
    %s93 = sphi 0, %s77
    %s99 = sphi 0, %s101
    %s102 = sphi 0, %s99
    %s103 = sphi 0, %s102
    %s119 = sphi 0, %s103
    %s125 = sphi 0, %s127
    %s128 = sphi 0, %s125
    %s129 = sphi 0, %s128
    %s145 = sphi 0, %s129
    %s151 = sphi 0, %s153
    %s154 = sphi 0, %s151
    %s155 = sphi 0, %s154
    %s171 = sphi 0, %s155
    %s181 = sphi 0, %s183
    %s184 = sphi 0, %s181
    %s185 = sphi 0, %s184
    %s201 = sphi 0, %s185
    %s211 = sphi 0, %s213
    %s214 = sphi 0, %s211
    %s215 = sphi 0, %s214
    %s231 = sphi 0, %s215
    %s243 = sphi 0, %s245
    %s246 = sphi 0, %s243
    %s247 = sphi 0, %s246
    %s263 = sphi 0, %s247
  $region4: #{product_vector_quantize_forward.1} parent=0 // loop_header_branch
    %17 = sbr.rel (%p15) target = $region8
  $region5: #{product_vector_quantize_forward.1} parent=0 // loop_body
    %s19 = ssub.s32 %s14, 1
    %s20 = ssub.s32 %s14, 2
    %s30 = sadd.s32 1, %s23
    %p31 = scmp.ge.s32.totalorder %s30, 1
    %s32 = scalar_select %p31, 0, %s30
    %s33 = sadd.s32 1, %s22
    %s34 = scalar_select %p31, %s33, %s22
    %p35 = scmp.ge.s32.totalorder %s34, 4
    %s36 = scalar_select %p35, 0, %s34
    %s37 = sadd.s32 1, %s21
    %s38 = scalar_select %p35, %s37, %s21
    %p39 = scmp.ge.s32.totalorder %s38, 2
    %s40 = scalar_select %p39, 0, %s38
    %s41 = ssub.s32 %s21, %s40
    %s42 = ssub.s32 %s22, %s36
    %s43 = sor.u32 %s41, %s42
    %s44 = ssub.s32 %s23, %s32
    %s45 = sor.u32 %s43, %s44
    %p46 = scmp.eq.s32.totalorder %s45, 0
    %s48 = sadd.s32 %s47, 1
    %s49 = scalar_select %p46, %s47, %s48
    %p52 = pneg %p46
    %p53 = scmp.eq.s32.totalorder %s14, 7
    %p54 = por %p52, %p53
    %p55 = scmp.ne.s32.totalorder %s47, %s50
    %p56 = scmp.eq.s32.totalorder %s14, 0
    %p57 = por %p55, %p56
    %p58 = scmp.ne.s32.totalorder %s47, %s50
    %p59 = scmp.eq.s32.totalorder %s19, 7
    %p60 = por %p58, %p59
    %p61 = scmp.ne.s32.totalorder %s50, %s51
    %p62 = scmp.eq.s32.totalorder %s19, 0
    %p63 = por %p61, %p62
    %p64 = scmp.ne.s32.totalorder %s50, %s51
    %p65 = scmp.eq.s32.totalorder %s20, 7
    %p66 = por %p64, %p65
    %p68 = scmp.ne.s32.totalorder %s51, %s67
    %p69 = scmp.eq.s32.totalorder %s20, 0
    %p70 = por %p68, %p69
    %s71 = ssub.s32 %s22, %s36
    %p72 = scmp.eq.s32.totalorder %s71, 0
    %s74 = sadd.s32 %s73, 1
    %s75 = scalar_select %p72, %s73, %s74
    %p78 = pneg %p72
    %p79 = scmp.eq.s32.totalorder %s14, 7
    %p80 = por %p78, %p79
    %p81 = scmp.ne.s32.totalorder %s73, %s76
    %p82 = scmp.eq.s32.totalorder %s14, 0
    %p83 = por %p81, %p82
    %p84 = scmp.ne.s32.totalorder %s73, %s76
    %p85 = scmp.eq.s32.totalorder %s19, 7
    %p86 = por %p84, %p85
    %p87 = scmp.ne.s32.totalorder %s76, %s77
    %p88 = scmp.eq.s32.totalorder %s19, 0
    %p89 = por %p87, %p88
    %p90 = scmp.ne.s32.totalorder %s76, %s77
    %p91 = scmp.eq.s32.totalorder %s20, 7
    %p92 = por %p90, %p91
    %p94 = scmp.ne.s32.totalorder %s77, %s93
    %p95 = scmp.eq.s32.totalorder %s20, 0
    %p96 = por %p94, %p95
    %s97 = ssub.s32 %s22, %s36
    %p98 = scmp.eq.s32.totalorder %s97, 0
    %s100 = sadd.s32 %s99, 1
    %s101 = scalar_select %p98, %s99, %s100
    %p104 = pneg %p98
    %p105 = scmp.eq.s32.totalorder %s14, 7
    %p106 = por %p104, %p105
    %p107 = scmp.ne.s32.totalorder %s99, %s102
    %p108 = scmp.eq.s32.totalorder %s14, 0
    %p109 = por %p107, %p108
    %p110 = scmp.ne.s32.totalorder %s99, %s102
    %p111 = scmp.eq.s32.totalorder %s19, 7
    %p112 = por %p110, %p111
    %p113 = scmp.ne.s32.totalorder %s102, %s103
    %p114 = scmp.eq.s32.totalorder %s19, 0
    %p115 = por %p113, %p114
    %p116 = scmp.ne.s32.totalorder %s102, %s103
    %p117 = scmp.eq.s32.totalorder %s20, 7
    %p118 = por %p116, %p117
    %p120 = scmp.ne.s32.totalorder %s103, %s119
    %p121 = scmp.eq.s32.totalorder %s20, 0
    %p122 = por %p120, %p121
    %s123 = ssub.s32 %s22, %s36
    %p124 = scmp.eq.s32.totalorder %s123, 0
    %s126 = sadd.s32 %s125, 1
    %s127 = scalar_select %p124, %s125, %s126
    %p130 = pneg %p124
    %p131 = scmp.eq.s32.totalorder %s14, 7
    %p132 = por %p130, %p131
    %p133 = scmp.ne.s32.totalorder %s125, %s128
    %p134 = scmp.eq.s32.totalorder %s14, 0
    %p135 = por %p133, %p134
    %p136 = scmp.ne.s32.totalorder %s125, %s128
    %p137 = scmp.eq.s32.totalorder %s19, 7
    %p138 = por %p136, %p137
    %p139 = scmp.ne.s32.totalorder %s128, %s129
    %p140 = scmp.eq.s32.totalorder %s19, 0
    %p141 = por %p139, %p140
    %p142 = scmp.ne.s32.totalorder %s128, %s129
    %p143 = scmp.eq.s32.totalorder %s20, 7
    %p144 = por %p142, %p143
    %p146 = scmp.ne.s32.totalorder %s129, %s145
    %p147 = scmp.eq.s32.totalorder %s20, 0
    %p148 = por %p146, %p147
    %s149 = ssub.s32 %s22, %s36
    %p150 = scmp.eq.s32.totalorder %s149, 0
    %s152 = sadd.s32 %s151, 1
    %s153 = scalar_select %p150, %s151, %s152
    %p156 = pneg %p150
    %p157 = scmp.eq.s32.totalorder %s14, 7
    %p158 = por %p156, %p157
    %p159 = scmp.ne.s32.totalorder %s151, %s154
    %p160 = scmp.eq.s32.totalorder %s14, 0
    %p161 = por %p159, %p160
    %p162 = scmp.ne.s32.totalorder %s151, %s154
    %p163 = scmp.eq.s32.totalorder %s19, 7
    %p164 = por %p162, %p163
    %p165 = scmp.ne.s32.totalorder %s154, %s155
    %p166 = scmp.eq.s32.totalorder %s19, 0
    %p167 = por %p165, %p166
    %p168 = scmp.ne.s32.totalorder %s154, %s155
    %p169 = scmp.eq.s32.totalorder %s20, 7
    %p170 = por %p168, %p169
    %p172 = scmp.ne.s32.totalorder %s155, %s171
    %p173 = scmp.eq.s32.totalorder %s20, 0
    %p174 = por %p172, %p173
    %s175 = ssub.s32 %s21, %s40
    %s176 = ssub.s32 %s22, %s36
    %s177 = sor.u32 %s175, %s176
    %s178 = ssub.s32 %s23, %s32
    %s179 = sor.u32 %s177, %s178
    %p180 = scmp.eq.s32.totalorder %s179, 0
    %s182 = sadd.s32 %s181, 1
    %s183 = scalar_select %p180, %s181, %s182
    %p186 = pneg %p180
    %p187 = scmp.eq.s32.totalorder %s14, 7
    %p188 = por %p186, %p187
    %p189 = scmp.ne.s32.totalorder %s181, %s184
    %p190 = scmp.eq.s32.totalorder %s14, 0
    %p191 = por %p189, %p190
    %p192 = scmp.ne.s32.totalorder %s181, %s184
    %p193 = scmp.eq.s32.totalorder %s19, 7
    %p194 = por %p192, %p193
    %p195 = scmp.ne.s32.totalorder %s184, %s185
    %p196 = scmp.eq.s32.totalorder %s19, 0
    %p197 = por %p195, %p196
    %p198 = scmp.ne.s32.totalorder %s184, %s185
    %p199 = scmp.eq.s32.totalorder %s20, 7
    %p200 = por %p198, %p199
    %p202 = scmp.ne.s32.totalorder %s185, %s201
    %p203 = scmp.eq.s32.totalorder %s20, 0
    %p204 = por %p202, %p203
    %s205 = ssub.s32 %s21, %s40
    %s206 = ssub.s32 %s22, %s36
    %s207 = sor.u32 %s205, %s206
    %s208 = ssub.s32 %s23, %s32
    %s209 = sor.u32 %s207, %s208
    %p210 = scmp.eq.s32.totalorder %s209, 0
    %s212 = sadd.s32 %s211, 1
    %s213 = scalar_select %p210, %s211, %s212
    %p216 = pneg %p210
    %p217 = scmp.eq.s32.totalorder %s14, 7
    %p218 = por %p216, %p217
    %p219 = scmp.ne.s32.totalorder %s211, %s214
    %p220 = scmp.eq.s32.totalorder %s14, 0
    %p221 = por %p219, %p220
    %p222 = scmp.ne.s32.totalorder %s211, %s214
    %p223 = scmp.eq.s32.totalorder %s19, 7
    %p224 = por %p222, %p223
    %p225 = scmp.ne.s32.totalorder %s214, %s215
    %p226 = scmp.eq.s32.totalorder %s19, 0
    %p227 = por %p225, %p226
    %p228 = scmp.ne.s32.totalorder %s214, %s215
    %p229 = scmp.eq.s32.totalorder %s20, 7
    %p230 = por %p228, %p229
    %p232 = scmp.ne.s32.totalorder %s215, %s231
    %p233 = scmp.eq.s32.totalorder %s20, 0
    %p234 = por %p232, %p233
    %s235 = smul.u32 %s21, 4
    %s236 = sadd.s32 %s235, %s22
    %s237 = smul.u32 %s40, 4
    %s238 = sadd.s32 %s237, %s36
    %s239 = ssub.s32 %s236, %s238
    %s240 = ssub.s32 %s23, %s32
    %s241 = sor.u32 %s239, %s240
    %p242 = scmp.eq.s32.totalorder %s241, 0
    %s244 = sadd.s32 %s243, 1
    %s245 = scalar_select %p242, %s243, %s244
    %p248 = pneg %p242
    %p249 = scmp.eq.s32.totalorder %s14, 7
    %p250 = por %p248, %p249
    %p251 = scmp.ne.s32.totalorder %s243, %s246
    %p252 = scmp.eq.s32.totalorder %s14, 0
    %p253 = por %p251, %p252
    %p254 = scmp.ne.s32.totalorder %s243, %s246
    %p255 = scmp.eq.s32.totalorder %s19, 7
    %p256 = por %p254, %p255
    %p257 = scmp.ne.s32.totalorder %s246, %s247
    %p258 = scmp.eq.s32.totalorder %s19, 0
    %p259 = por %p257, %p258
    %p260 = scmp.ne.s32.totalorder %s246, %s247
    %p261 = scmp.eq.s32.totalorder %s20, 7
    %p262 = por %p260, %p261
    %p264 = scmp.ne.s32.totalorder %s247, %s263
    %p265 = scmp.eq.s32.totalorder %s20, 0
    %p266 = por %p264, %p265
    %p267 = scmp.le.s32.totalorder 1, %s14
    %p268 = scmp.lt.s32.totalorder %s14, 9
    %p269 = pnand %p267, %p268
    %p270 = pneg %p269
    // Predicated region
    $region9: #{product_vector_quantize_forward.1} parent=5 // pred_check
      _
    $region10: #{product_vector_quantize_forward.1} parent=5 // pred_check_branch
      %272 = sbr.rel (%p269) target = $region12
    $region11: #{product_vector_quantize_forward.1} parent=5 // pred_region
      %s273 = ssub.s32 %s14, 1
    $region12: #{product_vector_quantize_forward.1} parent=5 // pred_fallthru
      _
    %p274 = scmp.lt.s32.totalorder %s14, 8
    // Predicated region
    $region13: #{product_vector_quantize_forward.1} parent=5 // pred_check
      %p275 = pneg %p274
    $region14: #{product_vector_quantize_forward.1} parent=5 // pred_check_branch
      %277 = sbr.rel (%p275) target = $region16
    $region15: #{product_vector_quantize_forward.1} parent=5 // pred_region
      // Predicated region
      $region17: #{product_vector_quantize_forward.1} parent=15 // pred_check
        %p278 = pneg %p57
      $region18: #{product_vector_quantize_forward.1} parent=15 // pred_check_branch
        %280 = sbr.rel (%p278) target = $region20
      $region19: #{product_vector_quantize_forward.1} parent=15 // pred_region
        %p281 = scmp.lt.s32.totalorder %s21, 1
        %s282 = scalar_select %p281, %s21, 1
        %p283 = scmp.lt.s32.totalorder %s22, 3
        %s284 = scalar_select %p283, %s22, 3
        %p285 = scmp.lt.s32.totalorder %s23, 0
        %s286 = scalar_select %p285, %s23, 0
        %s287 = sadd.s32 %s286, %s284
        %s288 = smul.addr %s282, 4
        %s289 = sadd.s32 %s287, %s288
        %s290 = smul.addr %s289, 2
        %s291 = scalar_lea.vmem %s0, %s290
      $region20: #{product_vector_quantize_forward.1} parent=15 // pred_fallthru
        _
      // Predicated region
      $region21: #{product_vector_quantize_forward.1} parent=15 // pred_check
        %p292 = pneg %p83
      $region22: #{product_vector_quantize_forward.1} parent=15 // pred_check_branch
        %294 = sbr.rel (%p292) target = $region24
      $region23: #{product_vector_quantize_forward.1} parent=15 // pred_region
        %p295 = scmp.lt.s32.totalorder %s22, 3
        %s296 = scalar_select %p295, %s22, 3
        %s297 = smul.addr %s296, 2
        %s298 = smul.addr %s297, 4
        %s299 = scalar_lea.vmem %s1, %s298
      $region24: #{product_vector_quantize_forward.1} parent=15 // pred_fallthru
        _
      // Predicated region
      $region25: #{product_vector_quantize_forward.1} parent=15 // pred_check
        %p300 = pneg %p109
      $region26: #{product_vector_quantize_forward.1} parent=15 // pred_check_branch
        %302 = sbr.rel (%p300) target = $region28
      $region27: #{product_vector_quantize_forward.1} parent=15 // pred_region
        %p303 = scmp.lt.s32.totalorder %s22, 3
        %s304 = scalar_select %p303, %s22, 3
        %s305 = smul.addr %s304, 16
        %s306 = smul.addr %s305, 4
        %s307 = scalar_lea.vmem %s2, %s306
      $region28: #{product_vector_quantize_forward.1} parent=15 // pred_fallthru
        _
      // Predicated region
      $region29: #{product_vector_quantize_forward.1} parent=15 // pred_check
        %p308 = pneg %p135
      $region30: #{product_vector_quantize_forward.1} parent=15 // pred_check_branch
        %310 = sbr.rel (%p308) target = $region32
      $region31: #{product_vector_quantize_forward.1} parent=15 // pred_region
        %p311 = scmp.lt.s32.totalorder %s22, 3
        %s312 = scalar_select %p311, %s22, 3
        %s313 = smul.addr %s312, 16
        %s314 = smul.addr %s313, 4
        %s315 = scalar_lea.vmem %s3, %s314
      $region32: #{product_vector_quantize_forward.1} parent=15 // pred_fallthru
        _
      // Predicated region
      $region33: #{product_vector_quantize_forward.1} parent=15 // pred_check
        %p316 = pneg %p161
      $region34: #{product_vector_quantize_forward.1} parent=15 // pred_check_branch
        %318 = sbr.rel (%p316) target = $region36
      $region35: #{product_vector_quantize_forward.1} parent=15 // pred_region
        %p319 = scmp.lt.s32.totalorder %s22, 3
        %s320 = scalar_select %p319, %s22, 3
        %s321 = scalar_lea.vmem %s4, %s320
      $region36: #{product_vector_quantize_forward.1} parent=15 // pred_fallthru
        _
    $region16: #{product_vector_quantize_forward.1} parent=5 // pred_fallthru
      _
    %p322 = scmp.le.s32.totalorder 1, %s14
    %p323 = scmp.lt.s32.totalorder %s14, 9
    %p324 = pnand %p322, %p323
    %p325 = pneg %p324
    // Predicated region
    $region37: #{product_vector_quantize_forward.1} parent=5 // pred_check
      _
    $region38: #{product_vector_quantize_forward.1} parent=5 // pred_check_branch
      %327 = sbr.rel (%p324) target = $region40
    $region39: #{product_vector_quantize_forward.1} parent=5 // pred_region
      %s328 = ssub.s32 %s14, 1
      %p329 = scmp.lt.s32.totalorder %s24, 1
      %s330 = scalar_select %p329, %s24, 1
      %p331 = scmp.lt.s32.totalorder %s25, 3
      %s332 = scalar_select %p331, %s25, 3
      %p333 = scmp.lt.s32.totalorder %s26, 0
      %s334 = scalar_select %p333, %s26, 0
      %s335 = sadd.s32 %s334, %s332
      %s336 = smul.addr %s330, 4
      %s337 = sadd.s32 %s335, %s336
      %s338 = smul.addr %s337, 2
      %s339 = scalar_lea.vmem %s0, %s338
      %p340 = pneg %p63
      %p341 = pneg %p60
      %p342 = scmp.lt.s32.totalorder %s25, 3
      %s343 = scalar_select %p342, %s25, 3
      %s344 = smul.addr %s343, 2
      %s345 = smul.addr %s344, 4
      %s346 = scalar_lea.vmem %s1, %s345
      %p347 = pneg %p89
      %p348 = pneg %p86
      %p349 = scmp.lt.s32.totalorder %s25, 3
      %s350 = scalar_select %p349, %s25, 3
      %s351 = smul.addr %s350, 16
      %s352 = smul.addr %s351, 4
      %s353 = scalar_lea.vmem %s2, %s352
      %p354 = pneg %p115
      %p355 = pneg %p112
      %p356 = scmp.lt.s32.totalorder %s25, 3
      %s357 = scalar_select %p356, %s25, 3
      %s358 = smul.addr %s357, 16
      %s359 = smul.addr %s358, 4
      %s360 = scalar_lea.vmem %s3, %s359
      %p361 = pneg %p141
      %p362 = pneg %p138
      %p363 = scmp.lt.s32.totalorder %s25, 3
      %s364 = scalar_select %p363, %s25, 3
      %s365 = scalar_lea.vmem %s4, %s364
      %p366 = pneg %p167
      %p367 = pneg %p164
      %p368 = pneg %p197
      %p369 = pneg %p194
      %p370 = scmp.lt.s32.totalorder %s24, 1
      %s371 = scalar_select %p370, %s24, 1
      %p372 = scmp.lt.s32.totalorder %s25, 3
      %s373 = scalar_select %p372, %s25, 3
      %p374 = scmp.lt.s32.totalorder %s26, 0
      %s375 = scalar_select %p374, %s26, 0
      %s376 = sadd.s32 %s375, %s373
      %s377 = smul.addr %s371, 4
      %s378 = sadd.s32 %s376, %s377
      %s379 = smul.addr %s378, 4
      %s380 = scalar_lea.vmem %s5, %s379
      %p381 = pneg %p227
      %p382 = pneg %p224
      %p383 = scmp.lt.s32.totalorder %s24, 1
      %s384 = scalar_select %p383, %s24, 1
      %p385 = scmp.lt.s32.totalorder %s25, 3
      %s386 = scalar_select %p385, %s25, 3
      %p387 = scmp.lt.s32.totalorder %s26, 0
      %s388 = scalar_select %p387, %s26, 0
      %s389 = sadd.s32 %s388, %s386
      %s390 = smul.addr %s384, 4
      %s391 = sadd.s32 %s389, %s390
      %s392 = smul.addr %s391, 4
      %s393 = scalar_lea.vmem %s6, %s392
      %p394 = pneg %p259
      %p395 = pneg %p256
      %s396 = smul.u32 %s24, 4
      %s397 = sadd.s32 %s396, %s25
      %p398 = scmp.lt.s32.totalorder %s397, 7
      %s399 = scalar_select %p398, %s397, 7
      %p400 = scmp.lt.s32.totalorder %s26, 0
      %s401 = scalar_select %p400, %s26, 0
      %s402 = sadd.s32 %s401, %s399
      %s403 = scalar_lea.vmem %s7, %s402
      %p404 = scmp.lt.s32.totalorder %s24, 1
      %s405 = scalar_select %p404, %s24, 1
      %p406 = scmp.lt.s32.totalorder %s25, 3
      %s407 = scalar_select %p406, %s25, 3
      %p408 = scmp.lt.s32.totalorder %s26, 0
      %s409 = scalar_select %p408, %s26, 0
      %s410 = sadd.s32 %s409, %s407
      %s411 = smul.addr %s405, 4
      %s412 = sadd.s32 %s410, %s411
      %s413 = smul.addr %s412, 2
      %s414 = scalar_lea.vmem %s0, %s413
      %p415 = scmp.lt.s32.totalorder %s25, 3
      %s416 = scalar_select %p415, %s25, 3
      %s417 = smul.addr %s416, 2
      %s418 = smul.addr %s417, 4
      %s419 = scalar_lea.vmem %s1, %s418
      %p420 = scmp.lt.s32.totalorder %s25, 3
      %s421 = scalar_select %p420, %s25, 3
      %s422 = smul.addr %s421, 16
      %s423 = smul.addr %s422, 4
      %s424 = scalar_lea.vmem %s2, %s423
      %p425 = scmp.lt.s32.totalorder %s25, 3
      %s426 = scalar_select %p425, %s25, 3
      %s427 = smul.addr %s426, 16
      %s428 = smul.addr %s427, 4
      %s429 = scalar_lea.vmem %s3, %s428
      %p430 = scmp.lt.s32.totalorder %s25, 3
      %s431 = scalar_select %p430, %s25, 3
      %s432 = scalar_lea.vmem %s4, %s431
      %p433 = scmp.lt.s32.totalorder %s24, 1
      %s434 = scalar_select %p433, %s24, 1
      %p435 = scmp.lt.s32.totalorder %s25, 3
      %s436 = scalar_select %p435, %s25, 3
      %p437 = scmp.lt.s32.totalorder %s26, 0
      %s438 = scalar_select %p437, %s26, 0
      %s439 = sadd.s32 %s438, %s436
      %s440 = smul.addr %s434, 4
      %s441 = sadd.s32 %s439, %s440
      %s442 = smul.addr %s441, 4
      %s443 = scalar_lea.vmem %s5, %s442
      %p444 = scmp.lt.s32.totalorder %s24, 1
      %s445 = scalar_select %p444, %s24, 1
      %p446 = scmp.lt.s32.totalorder %s25, 3
      %s447 = scalar_select %p446, %s25, 3
      %p448 = scmp.lt.s32.totalorder %s26, 0
      %s449 = scalar_select %p448, %s26, 0
      %s450 = sadd.s32 %s449, %s447
      %s451 = smul.addr %s445, 4
      %s452 = sadd.s32 %s450, %s451
      %s453 = smul.addr %s452, 4
      %s454 = scalar_lea.vmem %s6, %s453
      %s455 = smul.u32 %s24, 4
      %s456 = sadd.s32 %s455, %s25
      %p457 = scmp.lt.s32.totalorder %s456, 7
      %s458 = scalar_select %p457, %s456, 7
      %p459 = scmp.lt.s32.totalorder %s26, 0
      %s460 = scalar_select %p459, %s26, 0
      %s461 = sadd.s32 %s460, %s458
      %s462 = scalar_lea.vmem %s7, %s461
      %s463 = smul.u32 %s24, 4
      %s464 = sadd.s32 %s463, %s25
      %v466 = vld [vmem:[%s414] sm:$0x3]
      %v467 = vld [vmem:[%s419] sm:$0xf]
      %v468 = vld [vmem:[%s419 + $0x4] sm:$0xf]
      %v471 = vunpack.c.l.b16 %v467
      %v472 = vunpack.c.l.b16 %v468
      %v473 = vpack.c.b16 %v472, %v471
      %vm475 = vcmask 130048
      %v477 = vsel %vm475, %v466, 0
      %479 = vmatpush.bf16.msra.mxu0 0
      %480 = vmatpush.bf16.msra.mxu0 0
      %481 = vmatpush.bf16.msra.mxu0 0
      %482 = vmatpush.bf16.msra.mxu0 0
      %483 = vmatpush.bf16.msra.mxu0 0
      %484 = vmatpush.bf16.msra.mxu0 0
      %485 = vmatpush.bf16.msra.mxu0 0
      %486 = vmatpush.bf16.msra.mxu0 %v473
      %487 = vmatmul.bf16.gmra.mxu0 %v477
      %v488 = vpop.f32.mrf.mxu0
      %v489 = vadd.f32 0.0, %v488
      %v490 = vpop.f32.mrf.mxu0
      %491 = vdwg.mxu0
      %v492 = vpack.c.bf16 %v489, %v489
      %v493 = vld [vmem:[%s424] sm:$0xf]
      %v494 = vld [vmem:[%s424 + $0x4] sm:$0xf]
      %v495 = vld [vmem:[%s424 + $0x8] sm:$0xf]
      %v496 = vld [vmem:[%s424 + $0xc] sm:$0xf]
      %v497 = vld [vmem:[%s424 + $0x10] sm:$0xf]
      %v498 = vld [vmem:[%s424 + $0x14] sm:$0xf]
      %v499 = vld [vmem:[%s424 + $0x18] sm:$0xf]
      %v500 = vld [vmem:[%s424 + $0x1c] sm:$0xf]
      %v501 = vld [vmem:[%s424 + $0x20] sm:$0xf]
      %v502 = vld [vmem:[%s424 + $0x24] sm:$0xf]
      %v503 = vld [vmem:[%s424 + $0x28] sm:$0xf]
      %v504 = vld [vmem:[%s424 + $0x2c] sm:$0xf]
      %v505 = vld [vmem:[%s424 + $0x30] sm:$0xf]
      %v506 = vld [vmem:[%s424 + $0x34] sm:$0xf]
      %v507 = vld [vmem:[%s424 + $0x38] sm:$0xf]
      %v508 = vld [vmem:[%s424 + $0x3c] sm:$0xf]
      %v525 = vunpack.c.l.b16 %v493
      %v526 = vunpack.c.l.b16 %v494
      %v527 = vunpack.c.l.b16 %v495
      %v528 = vunpack.c.l.b16 %v496
      %v529 = vunpack.c.l.b16 %v497
      %v530 = vunpack.c.l.b16 %v498
      %v531 = vunpack.c.l.b16 %v499
      %v532 = vunpack.c.l.b16 %v500
      %v533 = vunpack.c.l.b16 %v501
      %v534 = vunpack.c.l.b16 %v502
      %v535 = vunpack.c.l.b16 %v503
      %v536 = vunpack.c.l.b16 %v504
      %v537 = vunpack.c.l.b16 %v505
      %v538 = vunpack.c.l.b16 %v506
      %v539 = vunpack.c.l.b16 %v507
      %v540 = vunpack.c.l.b16 %v508
      %v541 = vpack.c.b16 %v526, %v525
      %v542 = vpack.c.b16 %v528, %v527
      %v543 = vpack.c.b16 %v530, %v529
      %v544 = vpack.c.b16 %v532, %v531
      %v545 = vpack.c.b16 %v534, %v533
      %v546 = vpack.c.b16 %v536, %v535
      %v547 = vpack.c.b16 %v538, %v537
      %v548 = vpack.c.b16 %v540, %v539
      %vm549 = vcmask 64512
      %v551 = vsel %vm549, %v492, 0
      %v554 = vsel %vm549, %v541, 0
      %v557 = vsel %vm549, %v542, 0
      %v560 = vsel %vm549, %v543, 0
      %v563 = vsel %vm549, %v544, 0
      %v566 = vsel %vm549, %v545, 0
      %v569 = vsel %vm549, %v546, 0
      %v572 = vsel %vm549, %v547, 0
      %v575 = vsel %vm549, %v548, 0
      %577 = vmatpush.bf16.xpose.msra.mxu0 %v575
      %578 = vmatpush.bf16.xpose.msra.mxu0 %v572
      %579 = vmatpush.bf16.xpose.msra.mxu0 %v569
      %580 = vmatpush.bf16.xpose.msra.mxu0 %v566
      %581 = vmatpush.bf16.xpose.msra.mxu0 %v563
      %582 = vmatpush.bf16.xpose.msra.mxu0 %v560
      %583 = vmatpush.bf16.xpose.msra.mxu0 %v557
      %584 = vmatpush.bf16.xpose.msra.mxu0 %v554
      %585 = vmatmul.bf16.gmra.mxu0 %v551
      %v586 = vpop.f32.mrf.mxu0
      %v587 = vadd.f32 0.0, %v586
      %v588 = vpop.f32.mrf.mxu0
      %589 = vdwg.mxu0
      %vm590 = vcmask 1043456
      %v591 = vsel %vm590, %v587, -inf
      %592 = vmax.xlane.f32.xlu0 %v591
      %v593 = vpop.xlane.xlu0 %592
      %v594 = vlaneseq
      %v595 = vand.u32 %v594, 127
      %vm596 = vcmp.eq.f32.partialorder %v587, %v593
      %v597 = vsel %vm596, %v595, 128
      %v598 = vsel %vm590, %v597, 2147483647
      %v599 = vand.u32 %v598, 65535
      %v600 = vshra.s32 %v598, 16
      %v601 = vcvt.s32.f32 %v599
      %v602 = vcvt.s32.f32 %v600
      %603 = vmin.xlane.f32.xlu0 %v602
      %v604 = vpop.xlane.xlu0 %603
      %vm605 = vcmp.eq.f32.partialorder %v602, %v604
      %v606 = vsel %vm605, %v601, inf
      %607 = vmin.xlane.f32.xlu0 %v606
      %v608 = vpop.xlane.xlu0 %607
      %v609 = vcvt.f32.s32 %v608
      %v610 = vcvt.f32.s32 %v604
      %v611 = vshll.u32 %v610, 16
      %v612 = vadd.s32 %v611, %v609
      %vm613 = vcmask 3072
      %614 = vst.msk [vmem:[%s454] sm:$0xf] %vm613, %v612
      %vm615 = vcmp.eq.s32.totalorder %v595, %v612
      %v616 = vsel %vm615, 1, 0
      %v617 = vcvt.s32.f32 %v616
      %v618 = vpack.c.bf16 %v617, %v617
      %v619 = vld [vmem:[%s429] sm:$0xf]
      %v620 = vld [vmem:[%s429 + $0x4] sm:$0xf]
      %v621 = vld [vmem:[%s429 + $0x8] sm:$0xf]
      %v622 = vld [vmem:[%s429 + $0xc] sm:$0xf]
      %v623 = vld [vmem:[%s429 + $0x10] sm:$0xf]
      %v624 = vld [vmem:[%s429 + $0x14] sm:$0xf]
      %v625 = vld [vmem:[%s429 + $0x18] sm:$0xf]
      %v626 = vld [vmem:[%s429 + $0x1c] sm:$0xf]
      %v627 = vld [vmem:[%s429 + $0x20] sm:$0xf]
      %v628 = vld [vmem:[%s429 + $0x24] sm:$0xf]
      %v629 = vld [vmem:[%s429 + $0x28] sm:$0xf]
      %v630 = vld [vmem:[%s429 + $0x2c] sm:$0xf]
      %v631 = vld [vmem:[%s429 + $0x30] sm:$0xf]
      %v632 = vld [vmem:[%s429 + $0x34] sm:$0xf]
      %v633 = vld [vmem:[%s429 + $0x38] sm:$0xf]
      %v634 = vld [vmem:[%s429 + $0x3c] sm:$0xf]
      %v651 = vunpack.c.l.b16 %v619
      %v652 = vunpack.c.l.b16 %v620
      %v653 = vunpack.c.l.b16 %v621
      %v654 = vunpack.c.l.b16 %v622
      %v655 = vunpack.c.l.b16 %v623
      %v656 = vunpack.c.l.b16 %v624
      %v657 = vunpack.c.l.b16 %v625
      %v658 = vunpack.c.l.b16 %v626
      %v659 = vunpack.c.l.b16 %v627
      %v660 = vunpack.c.l.b16 %v628
      %v661 = vunpack.c.l.b16 %v629
      %v662 = vunpack.c.l.b16 %v630
      %v663 = vunpack.c.l.b16 %v631
      %v664 = vunpack.c.l.b16 %v632
      %v665 = vunpack.c.l.b16 %v633
      %v666 = vunpack.c.l.b16 %v634
      %v667 = vpack.c.b16 %v652, %v651
      %v668 = vpack.c.b16 %v654, %v653
      %v669 = vpack.c.b16 %v656, %v655
      %v670 = vpack.c.b16 %v658, %v657
      %v671 = vpack.c.b16 %v660, %v659
      %v672 = vpack.c.b16 %v662, %v661
      %v673 = vpack.c.b16 %v664, %v663
      %v674 = vpack.c.b16 %v666, %v665
      %683 = vmatpush.bf16.msra.mxu0 %v674
      %684 = vmatpush.bf16.msra.mxu0 %v673
      %685 = vmatpush.bf16.msra.mxu0 %v672
      %686 = vmatpush.bf16.msra.mxu0 %v671
      %687 = vmatpush.bf16.msra.mxu0 %v670
      %688 = vmatpush.bf16.msra.mxu0 %v669
      %689 = vmatpush.bf16.msra.mxu0 %v668
      %690 = vmatpush.bf16.msra.mxu0 %v667
      %691 = vmatmul.bf16.gmra.mxu0 %v618
      %v692 = vpop.f32.mrf.mxu0
      %v693 = vadd.f32 0.0, %v692
      %v694 = vpop.f32.mrf.mxu0
      %695 = vdwg.mxu0
      %vm696 = vcmask 125952
      %697 = vst.msk [vmem:[%s443] sm:$0xf] %vm696, %v693
      %v698 = vmul.f32 %v489, %v489
      %vm699 = vcmask 60416
      %v700 = vsel %vm699, %v698, 0.0
      %701 = vadd.xlane.f32.xlu0 %v700
      %v702 = vpop.xlane.xlu0 %701
      %v703 = vrot.slane %v702, 4
      %v704 = vadd.f32 %v702, %v703
      %v705 = vrot.slane %v704, 2
      %v706 = vadd.f32 %v704, %v705
      %v707 = vrot.slane %v706, 1
      %v708 = vadd.f32 %v706, %v707
      %s709 = vtos %v708
      %v710 = vstv %s709
      %v711 = vsel %vm613, %v593, 0.0
      %712 = vadd.xlane.f32.xlu0 %v711
      %v713 = vpop.xlane.xlu0 %712
      %v714 = vrot.slane %v713, 4
      %v715 = vadd.f32 %v713, %v714
      %v716 = vrot.slane %v715, 2
      %v717 = vadd.f32 %v715, %v716
      %v718 = vrot.slane %v717, 1
      %v719 = vadd.f32 %v717, %v718
      %s720 = vtos %v719
      %v721 = vstv %s720
      %v722 = vmul.f32 %v721, 2.0
      %v723 = vsub.f32 %v710, %v722
      %v724 = vadd.f32 %v723, 4.0
      %vm725 = vcmask 0
      %726 = vst.msk [vmem:[%s462] sm:$0x1] %vm725, %v724
      %p727 = scmp.lt.s32.totalorder %s24, 1
      %s728 = scalar_select %p727, %s24, 1
      %p729 = scmp.lt.s32.totalorder %s25, 3
      %s730 = scalar_select %p729, %s25, 3
      %p731 = scmp.lt.s32.totalorder %s26, 0
      %s732 = scalar_select %p731, %s26, 0
      %s733 = sadd.s32 %s732, %s730
      %s734 = smul.addr %s728, 4
      %s735 = sadd.s32 %s733, %s734
      %s736 = smul.addr %s735, 4
      %s737 = scalar_lea.vmem %s5, %s736
      %p738 = scmp.lt.s32.totalorder %s24, 1
      %s739 = scalar_select %p738, %s24, 1
      %p740 = scmp.lt.s32.totalorder %s25, 3
      %s741 = scalar_select %p740, %s25, 3
      %p742 = scmp.lt.s32.totalorder %s26, 0
      %s743 = scalar_select %p742, %s26, 0
      %s744 = sadd.s32 %s743, %s741
      %s745 = smul.addr %s739, 4
      %s746 = sadd.s32 %s744, %s745
      %s747 = smul.addr %s746, 4
      %s748 = scalar_lea.vmem %s6, %s747
      %s749 = smul.u32 %s24, 4
      %s750 = sadd.s32 %s749, %s25
      %p751 = scmp.lt.s32.totalorder %s750, 7
      %s752 = scalar_select %p751, %s750, 7
      %p753 = scmp.lt.s32.totalorder %s26, 0
      %s754 = scalar_select %p753, %s26, 0
      %s755 = sadd.s32 %s754, %s752
      %s756 = scalar_lea.vmem %s7, %s755
      // Predicated region
      $region41: #{product_vector_quantize_forward.1} parent=39 // pred_check
        %p757 = pneg %p194
      $region42: #{product_vector_quantize_forward.1} parent=39 // pred_check_branch
        %759 = sbr.rel (%p757) target = $region44
      $region43: #{product_vector_quantize_forward.1} parent=39 // pred_region
        _
      $region44: #{product_vector_quantize_forward.1} parent=39 // pred_fallthru
        _
      // Predicated region
      $region45: #{product_vector_quantize_forward.1} parent=39 // pred_check
        %p760 = pneg %p224
      $region46: #{product_vector_quantize_forward.1} parent=39 // pred_check_branch
        %762 = sbr.rel (%p760) target = $region48
      $region47: #{product_vector_quantize_forward.1} parent=39 // pred_region
        _
      $region48: #{product_vector_quantize_forward.1} parent=39 // pred_fallthru
        _
      // Predicated region
      $region49: #{product_vector_quantize_forward.1} parent=39 // pred_check
        %p763 = pneg %p256
      $region50: #{product_vector_quantize_forward.1} parent=39 // pred_check_branch
        %765 = sbr.rel (%p763) target = $region52
      $region51: #{product_vector_quantize_forward.1} parent=39 // pred_region
        %s766 = smul.u32 %s24, 4
        %s767 = sadd.s32 %s766, %s25
      $region52: #{product_vector_quantize_forward.1} parent=39 // pred_fallthru
        _
    $region40: #{product_vector_quantize_forward.1} parent=5 // pred_fallthru
      _
    %p768 = scmp.le.s32.totalorder 2, %s14
    // Predicated region
    $region53: #{product_vector_quantize_forward.1} parent=5 // pred_check
      %p769 = pneg %p768
    $region54: #{product_vector_quantize_forward.1} parent=5 // pred_check_branch
      %771 = sbr.rel (%p769) target = $region56
    $region55: #{product_vector_quantize_forward.1} parent=5 // pred_region
      %s772 = ssub.s32 %s14, 2
      // Predicated region
      $region57: #{product_vector_quantize_forward.1} parent=55 // pred_check
        %p773 = pneg %p200
      $region58: #{product_vector_quantize_forward.1} parent=55 // pred_check_branch
        %775 = sbr.rel (%p773) target = $region60
      $region59: #{product_vector_quantize_forward.1} parent=55 // pred_region
        %p776 = scmp.lt.s32.totalorder %s27, 1
        %s777 = scalar_select %p776, %s27, 1
        %p778 = scmp.lt.s32.totalorder %s28, 3
        %s779 = scalar_select %p778, %s28, 3
        %p780 = scmp.lt.s32.totalorder %s29, 0
        %s781 = scalar_select %p780, %s29, 0
        %s782 = sadd.s32 %s781, %s779
        %s783 = smul.addr %s777, 4
        %s784 = sadd.s32 %s782, %s783
        %s785 = smul.addr %s784, 4
        %s786 = scalar_lea.vmem %s5, %s785
      $region60: #{product_vector_quantize_forward.1} parent=55 // pred_fallthru
        _
      // Predicated region
      $region61: #{product_vector_quantize_forward.1} parent=55 // pred_check
        %p787 = pneg %p230
      $region62: #{product_vector_quantize_forward.1} parent=55 // pred_check_branch
        %789 = sbr.rel (%p787) target = $region64
      $region63: #{product_vector_quantize_forward.1} parent=55 // pred_region
        %p790 = scmp.lt.s32.totalorder %s27, 1
        %s791 = scalar_select %p790, %s27, 1
        %p792 = scmp.lt.s32.totalorder %s28, 3
        %s793 = scalar_select %p792, %s28, 3
        %p794 = scmp.lt.s32.totalorder %s29, 0
        %s795 = scalar_select %p794, %s29, 0
        %s796 = sadd.s32 %s795, %s793
        %s797 = smul.addr %s791, 4
        %s798 = sadd.s32 %s796, %s797
        %s799 = smul.addr %s798, 4
        %s800 = scalar_lea.vmem %s6, %s799
      $region64: #{product_vector_quantize_forward.1} parent=55 // pred_fallthru
        _
      // Predicated region
      $region65: #{product_vector_quantize_forward.1} parent=55 // pred_check
        %p801 = pneg %p262
      $region66: #{product_vector_quantize_forward.1} parent=55 // pred_check_branch
        %803 = sbr.rel (%p801) target = $region68
      $region67: #{product_vector_quantize_forward.1} parent=55 // pred_region
        %s804 = smul.u32 %s27, 4
        %s805 = sadd.s32 %s804, %s28
        %p806 = scmp.lt.s32.totalorder %s805, 7
        %s807 = scalar_select %p806, %s805, 7
        %p808 = scmp.lt.s32.totalorder %s29, 0
        %s809 = scalar_select %p808, %s29, 0
        %s810 = sadd.s32 %s809, %s807
        %s811 = scalar_lea.vmem %s7, %s810
      $region68: #{product_vector_quantize_forward.1} parent=55 // pred_fallthru
        _
    $region56: #{product_vector_quantize_forward.1} parent=5 // pred_fallthru
      _
  $region6: #{product_vector_quantize_forward.1} parent=0 // loop_footer
    %s18 = sadd.s32 1, %s14
  $region7: #{product_vector_quantize_forward.1} parent=0 // loop_footer_branch
    %13 = sbr.rel target = $region3
  $region8: #{product_vector_quantize_forward.1} parent=0 // loop_exit
    _

</llo_original>
